<compile_context>
chip_gen: v5e
topology: v5e:2x2
jax: 0.10.0
libtpu: 0.0.40
codegen_flags: <defaults>
</compile_context>

<pallas_src>
import functools

import jax
import jax.numpy as jnp
from jax.experimental import pallas as pl
from jax.experimental.pallas import tpu as pltpu


def linear_relu_kernel(x_ref, wt_ref, b_ref, o_ref, *, n_in):
    # x_ref: (TB, IN)   wt_ref: (IN, OUT)   b_ref: (1, OUT)   o_ref: (TB, OUT)
    x = x_ref[...].astype(jnp.float32)
    wt = wt_ref[...].astype(jnp.float32)
    # Bias seeds the accumulator; broadcasts (1, OUT) -> (TB, OUT).
    y = b_ref[...].astype(jnp.float32)
    # IN is tiny (3): statically-unrolled VPU broadcast multiply-adds instead
    # of a K=3 MXU pass.
    for k in range(n_in):
        y = y + x[:, k:k + 1] * wt[k:k + 1, :]
    y = jnp.maximum(y, 0.0)  # ReLU on the VPU
    o_ref[...] = y.astype(o_ref.dtype)


def model_forward(x, w, b, *, block_b=1024):
    """y = relu(x @ w.T + b) with w stored (OUT, IN) like torch.nn.Linear."""
    B, IN = x.shape
    OUT = w.shape[0]

    wt = jnp.asarray(w).T                 # (IN, OUT): pre-transpose once, outside the kernel
    b2d = jnp.asarray(b).reshape(1, OUT)  # 2-D for a TPU-friendly block

    if B <= block_b:
        # Single full-array block (block shape == array shape, no tiling rules).
        tb, b_pad = B, B
    else:
        # Batch-tiled: tb is a multiple of 8 (f32 sublane), pad B up to it.
        tb = block_b
        b_pad = pl.cdiv(B, tb) * tb

    xp = x if b_pad == B else jnp.pad(x, ((0, b_pad - B), (0, 0)))
    grid = (b_pad // tb,)

    out = pl.pallas_call(
        functools.partial(linear_relu_kernel, n_in=IN),
        out_shape=jax.ShapeDtypeStruct((b_pad, OUT), x.dtype),
        grid=grid,
        in_specs=[
            pl.BlockSpec((tb, IN), lambda i: (i, 0)),   # batch-tiled activations
            pl.BlockSpec((IN, OUT), lambda i: (0, 0)),  # weight resident every step
            pl.BlockSpec((1, OUT), lambda i: (0, 0)),   # bias resident every step
        ],
        out_specs=pl.BlockSpec((tb, OUT), lambda i: (i, 0)),
        compiler_params=pltpu.CompilerParams(
            dimension_semantics=("parallel",),  # shard batch across TCs (v7x)
        ),
    )(xp, wt, b2d)

    return out if b_pad == B else out[:B]


if __name__ == "__main__":
    key = jax.random.PRNGKey(0)
    k_x, k_w, k_b = jax.random.split(key, 3)

    B, IN, OUT = 8, 3, 3  # Linear(3, 3); small batch

    # Deterministic parameter init (mimic torch's uniform(-1/sqrt(in), 1/sqrt(in)))
    bound = 1.0 / jnp.sqrt(jnp.float32(IN))
    w = jax.random.uniform(k_w, (OUT, IN), jnp.float32, -bound, bound)
    b = jax.random.uniform(k_b, (OUT,), jnp.float32, -bound, bound)

    x = jax.random.normal(k_x, (B, IN), jnp.float32)

    out = model_forward(x, w, b)
    out = jax.block_until_ready(out)

    # Reference check in plain JAX
    ref = jnp.maximum(x @ w.T + b, 0.0)
    assert out.shape == (B, OUT)
    assert jnp.allclose(out, ref, atol=1e-5, rtol=1e-5)

    print("KERNEL_OK")
</pallas_src>

<mosaic_0001>
module attributes {stable_mosaic.version = 11 : i64} {
  func.func @linear_relu_kernel(%arg0: i32, %arg1: memref<8x3xf32, #tpu.memory_space<vmem>>, %arg2: memref<3x3xf32, #tpu.memory_space<vmem>>, %arg3: memref<1x3xf32, #tpu.memory_space<vmem>>, %arg4: memref<8x3xf32, #tpu.memory_space<vmem>>) attributes {dimension_semantics = [#tpu.dimension_semantics<parallel>], iteration_bounds = array<i64: 1>, scalar_prefetch = 0 : i64, scratch_operands = 0 : i64, tpu.core_type = #tpu.core_type<tc>, window_params = [{transform_indices = @transform_0, window_bounds = array<i64: 8, 3>}, {pipeline_mode = #tpu.pipeline_mode<synchronous>, transform_indices = @transform_1, window_bounds = array<i64: 3, 3>}, {pipeline_mode = #tpu.pipeline_mode<synchronous>, transform_indices = @transform_2, window_bounds = array<i64: 1, 3>}, {transform_indices = @transform_3, window_bounds = array<i64: 8, 3>}]} {
    %c0 = arith.constant 0 : index
    %c0_0 = arith.constant 0 : index
    %0 = vector.load %arg1[%c0, %c0_0] : memref<8x3xf32, #tpu.memory_space<vmem>>, vector<8x3xf32>
    %c0_1 = arith.constant 0 : index
    %c0_2 = arith.constant 0 : index
    %1 = vector.load %arg2[%c0_1, %c0_2] : memref<3x3xf32, #tpu.memory_space<vmem>>, vector<3x3xf32>
    %c0_3 = arith.constant 0 : index
    %c0_4 = arith.constant 0 : index
    %2 = vector.load %arg3[%c0_3, %c0_4] : memref<1x3xf32, #tpu.memory_space<vmem>>, vector<1x3xf32>
    %3 = vector.extract_strided_slice %0 {offsets = [0, 0], sizes = [8, 1], strides = [1, 1]} : vector<8x3xf32> to vector<8x1xf32>
    %4 = vector.extract_strided_slice %1 {offsets = [0, 0], sizes = [1, 3], strides = [1, 1]} : vector<3x3xf32> to vector<1x3xf32>
    %5 = vector.broadcast %3 : vector<8x1xf32> to vector<8x3xf32>
    %6 = vector.broadcast %4 : vector<1x3xf32> to vector<8x3xf32>
    %7 = arith.mulf %5, %6 : vector<8x3xf32>
    %8 = vector.broadcast %2 : vector<1x3xf32> to vector<8x3xf32>
    %9 = arith.addf %8, %7 : vector<8x3xf32>
    %10 = vector.extract_strided_slice %0 {offsets = [0, 1], sizes = [8, 1], strides = [1, 1]} : vector<8x3xf32> to vector<8x1xf32>
    %11 = vector.extract_strided_slice %1 {offsets = [1, 0], sizes = [1, 3], strides = [1, 1]} : vector<3x3xf32> to vector<1x3xf32>
    %12 = vector.broadcast %10 : vector<8x1xf32> to vector<8x3xf32>
    %13 = vector.broadcast %11 : vector<1x3xf32> to vector<8x3xf32>
    %14 = arith.mulf %12, %13 : vector<8x3xf32>
    %15 = arith.addf %9, %14 : vector<8x3xf32>
    %16 = vector.extract_strided_slice %0 {offsets = [0, 2], sizes = [8, 1], strides = [1, 1]} : vector<8x3xf32> to vector<8x1xf32>
    %17 = vector.extract_strided_slice %1 {offsets = [2, 0], sizes = [1, 3], strides = [1, 1]} : vector<3x3xf32> to vector<1x3xf32>
    %18 = vector.broadcast %16 : vector<8x1xf32> to vector<8x3xf32>
    %19 = vector.broadcast %17 : vector<1x3xf32> to vector<8x3xf32>
    %20 = arith.mulf %18, %19 : vector<8x3xf32>
    %21 = arith.addf %15, %20 : vector<8x3xf32>
    %cst = arith.constant 0.000000e+00 : f32
    %22 = vector.broadcast %cst : f32 to vector<8x3xf32>
    %23 = arith.maximumf %21, %22 : vector<8x3xf32>
    %c0_5 = arith.constant 0 : index
    %c0_6 = arith.constant 0 : index
    %24 = vector.load %arg4[%c0_5, %c0_6] : memref<8x3xf32, #tpu.memory_space<vmem>>, vector<8x3xf32>
    tpu.vector_store %arg4[%c0_5, %c0_6], %23 {strides = array<i32>} : memref<8x3xf32, #tpu.memory_space<vmem>>, vector<8x3xf32>,
    return
  }
  func.func @transform_0(%arg0: i32) -> (i32, i32) {
    %c0_i32 = arith.constant 0 : i32
    %c0_i32_0 = arith.constant 0 : i32
    return %arg0, %c0_i32 : i32, i32
  }
  func.func @transform_1(%arg0: i32) -> (i32, i32) {
    %c0_i32 = arith.constant 0 : i32
    %c0_i32_0 = arith.constant 0 : i32
    %c0_i32_1 = arith.constant 0 : i32
    return %c0_i32, %c0_i32_0 : i32, i32
  }
  func.func @transform_2(%arg0: i32) -> (i32, i32) {
    %c0_i32 = arith.constant 0 : i32
    %c0_i32_0 = arith.constant 0 : i32
    %c0_i32_1 = arith.constant 0 : i32
    return %c0_i32, %c0_i32_0 : i32, i32
  }
  func.func @transform_3(%arg0: i32) -> (i32, i32) {
    %c0_i32 = arith.constant 0 : i32
    %c0_i32_0 = arith.constant 0 : i32
    return %arg0, %c0_i32 : i32, i32
  }
}

</mosaic_0001>

<llo_original>
// kernel: tpu_custom_call.1
$region0: #{tpu_custom_call.1}
  #allocation0 [shape = 'u32[]', space=smem, size = 0x4, offset = 0x4, fixed_abs, tag = 'smem constant byte address 0x4 - core index']
  #allocation1 [shape = 'u32[72,128]{1,0:T(1,128)}', space=vmem, size = 0x9000, scoped, tag = 'internal scratch']
  %s0 = inlined_call_operand.vmem [shape: f32[8,3], index: 0, kind: input, shape index: {}]
  %s1 = inlined_call_operand.vmem [shape: f32[3,3], index: 1, kind: input, shape index: {}]
  %s2 = inlined_call_operand.vmem [shape: f32[1,3], index: 2, kind: input, shape index: {}]
  %s3 = inlined_call_operand.vmem [shape: f32[8,3], index: 3, kind: output, shape index: {}]
  %s4 = sld [smem:[#allocation0]]
  $region22: #{tpu_custom_call.1} parent=0
    _
  %s6 = ssub.s32 1, %s4
  %s7 = scalar_select 0, %s6, %s4
  // Predicated region
  $region2: #{tpu_custom_call.1} parent=0 // pred_check
    _
  $region3: #{tpu_custom_call.1} parent=0 // pred_check_branch
    %9 = sbr.rel (0) target = $region5
  $region4: #{tpu_custom_call.1} parent=0 // pred_region
    _
  $region5: #{tpu_custom_call.1} parent=0 // pred_fallthru
    _
  // Predicated region
  $region6: #{tpu_custom_call.1} parent=0 // pred_check
    _
  $region7: #{tpu_custom_call.1} parent=0 // pred_check_branch
    %11 = sbr.rel (0) target = $region9
  $region8: #{tpu_custom_call.1} parent=0 // pred_region
    _
  $region9: #{tpu_custom_call.1} parent=0 // pred_fallthru
    _
  // Predicated region
  $region10: #{tpu_custom_call.1} parent=0 // pred_check
    _
  $region11: #{tpu_custom_call.1} parent=0 // pred_check_branch
    %13 = sbr.rel (0) target = $region13
  $region12: #{tpu_custom_call.1} parent=0 // pred_region
    _
  $region13: #{tpu_custom_call.1} parent=0 // pred_fallthru
    _
  %v14 = vld [vmem:[%s0] sm:$0xff]
  %v15 = vld [vmem:[%s1] sm:$0x7]
  %v16 = vld [vmem:[%s2] sm:$0x1]
  %18 = vset.pattern.permute.xlu0 0
  %19 = vperm.xlu0 %18, %v14
  %v20 = vpop.permute.xlu0 %19
  %v22 = vperm.slane %v15, 0
  %v23 = vmul.f32 %v20, %v22
  %v25 = vperm.slane %v16, 0
  %v27 = vadd.f32 %v25, %v23
  %28 = vset.pattern.permute.xlu0 1
  %29 = vperm.xlu0 %28, %v14
  %v30 = vpop.permute.xlu0 %29
  %v32 = vperm.slane %v15, 1
  %v33 = vmul.f32 %v30, %v32
  %v34 = vadd.f32 %v27, %v33
  %35 = vset.pattern.permute.xlu0 2
  %36 = vperm.xlu0 %35, %v14
  %v37 = vpop.permute.xlu0 %36
  %v39 = vperm.slane %v15, 2
  %v40 = vmul.f32 %v37, %v39
  %v41 = vadd.f32 %v34, %v40
  %v42 = vmax.f32 %v41, 0.0
  %vm43 = vcmask 23552
  %44 = vst.msk [vmem:[%s3] sm:$0xff] %vm43, %v42
  // Predicated region
  $region14: #{tpu_custom_call.1} parent=0 // pred_check
    _
  $region15: #{tpu_custom_call.1} parent=0 // pred_check_branch
    %46 = sbr.rel (0) target = $region17
  $region16: #{tpu_custom_call.1} parent=0 // pred_region
    _
  $region17: #{tpu_custom_call.1} parent=0 // pred_fallthru
    _
  // Predicated region
  $region18: #{tpu_custom_call.1} parent=0 // pred_check
    _
  $region19: #{tpu_custom_call.1} parent=0 // pred_check_branch
    %48 = sbr.rel (0) target = $region21
  $region20: #{tpu_custom_call.1} parent=0 // pred_region
    _
  $region21: #{tpu_custom_call.1} parent=0 // pred_fallthru
    _

</llo_original>
